<compile_context>
chip_gen: v6e
topology: v6e:2x2x1
jax: 0.10.0
libtpu: 0.0.40
codegen_flags: <defaults>
</compile_context>

<pallas_src>
import jax
import jax.numpy as jnp
from jax.experimental import pallas as pl
from jax.experimental.pallas import tpu as pltpu


def _gaussian_act_kernel(x_ref, eps_ref, stdev_ref, o_ref):
    # stdev_ref is (1, L); exp broadcasts across the tile's sublanes.
    scale = jnp.exp(stdev_ref[...])
    o_ref[...] = (x_ref[...] + scale * eps_ref[...]).astype(o_ref.dtype)


def _fold_factor(batch: int, size: int, max_lane: int = 4096) -> int:
    """Fold batch rows into the lane axis (free row-major reshape) up to max_lane."""
    r = 1
    while batch % (r * 2) == 0 and (r * 2) * size <= max_lane:
        r *= 2
    return r


def _rows_per_tile(n_rows: int, lane: int, tile_bytes: int = 2 << 20) -> int:
    """Rows per block: multiple of 8, ~tile_bytes of f32 per stream, capped at n_rows."""
    tb = max(1, tile_bytes // (lane * 4))
    tb = (tb // 8) * 8
    if tb < 8 or tb >= n_rows:
        return n_rows  # full extent is always a legal block size
    return tb


def gaussian_activation(data: jax.Array, st_dev: jax.Array, key: jax.Array) -> jax.Array:
    """data: (B, size) f32, st_dev: (size,) f32 -> (B, size) f32 reparameterized sample."""
    B, D = data.shape
    assert st_dev.shape == (D,)

    eps = jax.random.normal(key, (B, D), dtype=jnp.float32)

    # Fold batch rows into the lane axis for a lane-dense (wide-store) layout.
    r = _fold_factor(B, D)
    Bf, L = B // r, r * D
    data_f = data.reshape(Bf, L)
    eps_f = eps.reshape(Bf, L)
    stdev_f = jnp.tile(st_dev, r).reshape(1, L)

    tb = _rows_per_tile(Bf, L)
    grid = (pl.cdiv(Bf, tb),)

    out_f = pl.pallas_call(
        _gaussian_act_kernel,
        out_shape=jax.ShapeDtypeStruct((Bf, L), data.dtype),
        grid=grid,
        in_specs=[
            pl.BlockSpec((tb, L), lambda i: (i, 0)),   # data tile
            pl.BlockSpec((tb, L), lambda i: (i, 0)),   # eps tile
            pl.BlockSpec((1, L), lambda i: (0, 0)),    # st_dev, VMEM-resident
        ],
        out_specs=pl.BlockSpec((tb, L), lambda i: (i, 0)),
        compiler_params=pltpu.CompilerParams(
            dimension_semantics=("parallel",),
        ),
    )(data_f, eps_f, stdev_f)

    return out_f.reshape(B, D)


if __name__ == "__main__":
    key = jax.random.PRNGKey(0)
    k_data, k_noise = jax.random.split(key)

    B, SIZE = 16, 32  # small example shapes consistent with the module
    data = jax.random.normal(k_data, (B, SIZE), dtype=jnp.float32)
    # Deterministic parameter init, matching nn.Parameter(torch.ones(size) * 0.5)
    st_dev = jnp.full((SIZE,), 0.5, dtype=jnp.float32)

    out = gaussian_activation(data, st_dev, k_noise)
    out = jax.block_until_ready(out)

    assert out.shape == (B, SIZE) and out.dtype == jnp.float32
    assert jnp.isfinite(out).all()

    # Pure-JAX reference with the same noise key: the fused kernel must match.
    eps_ref = jax.random.normal(k_noise, (B, SIZE), dtype=jnp.float32)
    ref = data + jnp.exp(st_dev)[None, :] * eps_ref
    assert jnp.allclose(out, ref, atol=1e-5, rtol=1e-5)

    print("KERNEL_OK")
</pallas_src>

<mosaic_0001>
module attributes {stable_mosaic.version = 11 : i64} {
  func.func @_gaussian_act_kernel(%arg0: i32, %arg1: memref<1x512xf32, #tpu.memory_space<vmem>>, %arg2: memref<1x512xf32, #tpu.memory_space<vmem>>, %arg3: memref<1x512xf32, #tpu.memory_space<vmem>>, %arg4: memref<1x512xf32, #tpu.memory_space<vmem>>) attributes {dimension_semantics = [#tpu.dimension_semantics<parallel>], iteration_bounds = array<i64: 1>, scalar_prefetch = 0 : i64, scratch_operands = 0 : i64, tpu.core_type = #tpu.core_type<tc>, window_params = [{transform_indices = @transform_0, window_bounds = array<i64: 1, 512>}, {transform_indices = @transform_1, window_bounds = array<i64: 1, 512>}, {pipeline_mode = #tpu.pipeline_mode<synchronous>, transform_indices = @transform_2, window_bounds = array<i64: 1, 512>}, {transform_indices = @transform_3, window_bounds = array<i64: 1, 512>}]} {
    %c0 = arith.constant 0 : index
    %c0_0 = arith.constant 0 : index
    %0 = vector.load %arg3[%c0, %c0_0] : memref<1x512xf32, #tpu.memory_space<vmem>>, vector<1x512xf32>
    %1 = math.exp %0 : vector<1x512xf32>
    %c0_1 = arith.constant 0 : index
    %c0_2 = arith.constant 0 : index
    %2 = vector.load %arg1[%c0_1, %c0_2] : memref<1x512xf32, #tpu.memory_space<vmem>>, vector<1x512xf32>
    %c0_3 = arith.constant 0 : index
    %c0_4 = arith.constant 0 : index
    %3 = vector.load %arg2[%c0_3, %c0_4] : memref<1x512xf32, #tpu.memory_space<vmem>>, vector<1x512xf32>
    %4 = arith.mulf %1, %3 : vector<1x512xf32>
    %5 = arith.addf %2, %4 : vector<1x512xf32>
    %c0_5 = arith.constant 0 : index
    %c0_6 = arith.constant 0 : index
    %6 = vector.load %arg4[%c0_5, %c0_6] : memref<1x512xf32, #tpu.memory_space<vmem>>, vector<1x512xf32>
    tpu.vector_store %arg4[%c0_5, %c0_6], %5 {strides = array<i32>} : memref<1x512xf32, #tpu.memory_space<vmem>>, vector<1x512xf32>,
    return
  }
  func.func @transform_0(%arg0: i32) -> (i32, i32) {
    %c0_i32 = arith.constant 0 : i32
    %c0_i32_0 = arith.constant 0 : i32
    return %arg0, %c0_i32 : i32, i32
  }
  func.func @transform_1(%arg0: i32) -> (i32, i32) {
    %c0_i32 = arith.constant 0 : i32
    %c0_i32_0 = arith.constant 0 : i32
    return %arg0, %c0_i32 : i32, i32
  }
  func.func @transform_2(%arg0: i32) -> (i32, i32) {
    %c0_i32 = arith.constant 0 : i32
    %c0_i32_0 = arith.constant 0 : i32
    %c0_i32_1 = arith.constant 0 : i32
    return %c0_i32, %c0_i32_0 : i32, i32
  }
  func.func @transform_3(%arg0: i32) -> (i32, i32) {
    %c0_i32 = arith.constant 0 : i32
    %c0_i32_0 = arith.constant 0 : i32
    return %arg0, %c0_i32 : i32, i32
  }
}

</mosaic_0001>

<llo_original>
// kernel: tpu_custom_call.1
$region0: #{tpu_custom_call.1}
  #allocation0 [shape = 'u32[]', space=smem, size = 0x4, offset = 0x4, fixed_abs, tag = 'smem constant byte address 0x4 - core index']
  #allocation1 [shape = 'u32[144,128]{1,0:T(1,128)}', space=vmem, size = 0x12000, scoped, tag = 'internal scratch']
  %s0 = inlined_call_operand.hbm [shape: f32[1,512], index: 0, kind: input, shape index: {}]
  %s1 = inlined_call_operand.hbm [shape: f32[1,512], index: 1, kind: input, shape index: {}]
  %s2 = inlined_call_operand.hbm [shape: f32[1,512], index: 2, kind: input, shape index: {}]
  %s3 = inlined_call_operand.hbm [shape: f32[1,512], index: 3, kind: output, shape index: {}]
  %s4 = sld [smem:[#allocation0]]
  $region34: #{tpu_custom_call.1} parent=0
    _
  %s6 = ssub.s32 1, %s4
  %s7 = scalar_select 0, %s6, %s4
  $region1: #{tpu_custom_call.1} parent=0
    #allocation2 [shape = 'u8[2048]{0}', space=vmem, size = 0x800, scoped, tag = 'input window, operand 0, single buffered']
    #allocation3 [shape = 's32[1]{0}', space=sflag, size = 0x4, scoped, tag = 'scoped memory for tpu_custom_call.1']
    #allocation4 [shape = 's32[1]{0}', space=sflag, size = 0x4, scoped, tag = 'scoped memory for tpu_custom_call.1']
    #allocation5 [shape = 'u8[2048]{0}', space=vmem, size = 0x800, scoped, tag = 'input window, operand 1, single buffered']
    #allocation6 [shape = 's32[1]{0}', space=sflag, size = 0x4, scoped, tag = 'scoped memory for tpu_custom_call.1']
    #allocation7 [shape = 'u8[2048]{0}', space=vmem, size = 0x800, scoped, tag = 'input window, operand 2, single buffered']
    #allocation8 [shape = 'u8[2048]{0}', space=vmem, size = 0x800, scoped, tag = 'output window, operand 0, single buffered']
    %8 = vsyncpa [#allocation3], 0
    %9 = vsyncpa [#allocation6], 0
    %10 = vsyncpa [#allocation4], 0
    // Predicated region
    $region2: #{tpu_custom_call.1} parent=1 // pred_check
      _
    $region3: #{tpu_custom_call.1} parent=1 // pred_check_branch
      %12 = sbr.rel (0) target = $region5
    $region4: #{tpu_custom_call.1} parent=1 // pred_region
      %s14 = ssub.s32 64, 64
      %15 = vsyncadd [#allocation3], %s14
      %s17 = sshll.u32 [#allocation2], 4
      %s18 = int_to_ptr.vmem [resolvable:$true] %s17
      %20 = dma.hbm_to_vmem [thread:$0]  %s0, 64, %s18, [#allocation3]
    $region5: #{tpu_custom_call.1} parent=1 // pred_fallthru
      _
    // Predicated region
    $region6: #{tpu_custom_call.1} parent=1 // pred_check
      _
    $region7: #{tpu_custom_call.1} parent=1 // pred_check_branch
      %22 = sbr.rel (0) target = $region9
    $region8: #{tpu_custom_call.1} parent=1 // pred_region
      %s24 = ssub.s32 64, 64
      %25 = vsyncadd [#allocation6], %s24
      %s27 = sshll.u32 [#allocation5], 4
      %s28 = int_to_ptr.vmem [resolvable:$true] %s27
      %30 = dma.hbm_to_vmem [thread:$0]  %s1, 64, %s28, [#allocation6]
    $region9: #{tpu_custom_call.1} parent=1 // pred_fallthru
      _
    // Predicated region
    $region10: #{tpu_custom_call.1} parent=1 // pred_check
      _
    $region11: #{tpu_custom_call.1} parent=1 // pred_check_branch
      %32 = sbr.rel (0) target = $region13
    $region12: #{tpu_custom_call.1} parent=1 // pred_region
      %s34 = ssub.s32 64, 64
      %35 = vsyncadd [#allocation6], %s34
      %s37 = sshll.u32 [#allocation7], 4
      %s38 = int_to_ptr.vmem [resolvable:$true] %s37
      %40 = dma.hbm_to_vmem [thread:$0]  %s2, 64, %s38, [#allocation6]
    $region13: #{tpu_custom_call.1} parent=1 // pred_fallthru
      _
    // Predicated region
    $region14: #{tpu_custom_call.1} parent=1 // pred_check
      _
    $region15: #{tpu_custom_call.1} parent=1 // pred_check_branch
      %42 = sbr.rel (0) target = $region17
    $region16: #{tpu_custom_call.1} parent=1 // pred_region
      %43 = dma.done [#allocation3], 64
    $region17: #{tpu_custom_call.1} parent=1 // pred_fallthru
      _
    // Predicated region
    $region18: #{tpu_custom_call.1} parent=1 // pred_check
      _
    $region19: #{tpu_custom_call.1} parent=1 // pred_check_branch
      %45 = sbr.rel (0) target = $region21
    $region20: #{tpu_custom_call.1} parent=1 // pred_region
      %46 = dma.done [#allocation6], 64
    $region21: #{tpu_custom_call.1} parent=1 // pred_fallthru
      _
    // Predicated region
    $region22: #{tpu_custom_call.1} parent=1 // pred_check
      _
    $region23: #{tpu_custom_call.1} parent=1 // pred_check_branch
      %48 = sbr.rel (0) target = $region25
    $region24: #{tpu_custom_call.1} parent=1 // pred_region
      %49 = dma.done [#allocation6], 64
    $region25: #{tpu_custom_call.1} parent=1 // pred_fallthru
      _
    %v50 = vld [vmem:[#allocation7] sm:$0xf]
    %v51 = vmul.f32 %v50, 1.442695
    %v52 = vpow.pop %v51
    %v53 = vld [vmem:[#allocation2] sm:$0xf]
    %v54 = vld [vmem:[#allocation5] sm:$0xf]
    %v55 = vmul.f32 %v52, %v54
    %v56 = vadd.f32 %v53, %v55
    %v57 = vlaneseq
    %vm58 = vcmp.ge.s32.totalorder %v57, 0
    %vm59 = vcmp.lt.s32.totalorder %v57, 512
    %vm60 = vmand %vm58, %vm59
    %61 = vst.msk [vmem:[#allocation8] sm:$0xf] %vm60, %v56
    // Predicated region
    $region26: #{tpu_custom_call.1} parent=1 // pred_check
      _
    $region27: #{tpu_custom_call.1} parent=1 // pred_check_branch
      %63 = sbr.rel (0) target = $region29
    $region28: #{tpu_custom_call.1} parent=1 // pred_region
      %s65 = ssub.s32 64, 64
      %66 = vsyncadd [#allocation4], %s65
      %s68 = sshll.u32 [#allocation8], 4
      %s69 = int_to_ptr.vmem [resolvable:$true] %s68
      %71 = dma.vmem_to_hbm [thread:$0]  %s69, 64, %s3, [#allocation4]
    $region29: #{tpu_custom_call.1} parent=1 // pred_fallthru
      _
    // Predicated region
    $region30: #{tpu_custom_call.1} parent=1 // pred_check
      _
    $region31: #{tpu_custom_call.1} parent=1 // pred_check_branch
      %73 = sbr.rel (0) target = $region33
    $region32: #{tpu_custom_call.1} parent=1 // pred_region
      %74 = dma.done [#allocation4], 64
    $region33: #{tpu_custom_call.1} parent=1 // pred_fallthru
      _
    %75 = vsyncpa [#allocation3], 1
    %76 = vsyncpa [#allocation6], 1
    %77 = vsyncpa [#allocation4], 1

</llo_original>
